<compile_context>
chip_gen: v7x
topology: tpu7x:2x2x1
jax: 0.10.0
libtpu: 0.0.40
codegen_flags: <defaults>
</compile_context>

<pallas_src>
import jax
import jax.numpy as jnp
from jax.experimental import pallas as pl
from jax.experimental.pallas import tpu as pltpu

_K = 16  # spike time steps (mtn default n_neurons=16)


def _sign(x):
    return jnp.where(x > 0.0, 1.0, jnp.where(x < 0.0, -1.0, 0.0)).astype(jnp.float32)


def _fs_quant_sum(x_abs, v_max):
    """Sum over the K spike steps of fs_coding with h=d=T=v_max*2^-(t+1) (mtn fast=False).

    Greedy binary decomposition: z_t = (v > v_max*2^-(t+1)); out += z_t*step; v -= z_t*step.
    `v_max` may be a per-element array, which fuses the positive/negative mask
    branches of OATN/OATN2 into a single elementwise pass (no gather/scatter)."""
    v = x_abs
    out = jnp.zeros_like(x_abs)
    for t in range(_K):
        step = v_max * jnp.float32(2.0 ** (-(t + 1)))
        z = (v > step).astype(jnp.float32)
        fired = z * step
        out = out + fired
        v = v - fired
    return out


def _oatn_precise(x):
    """OATN(x, fast=False, hight_acc=True, hight_acc_fast=False), summed over spike steps."""
    x = jnp.clip(x, -200.0, 700.0)
    s = _sign(x)
    a = jnp.abs(x)
    v_max = jnp.where(x >= 0.0, jnp.float32(700.0), jnp.float32(200.0))
    return _fs_quant_sum(a, v_max) * s


def _oatn2_precise(x):
    """OATN2(x, fast=False, thres1=2, thres2=50), summed over spike steps."""
    x = jnp.clip(x, -50.0, 50.0)
    s = _sign(x)
    a = jnp.abs(x)
    v_max = jnp.where(a < 2.0, jnp.float32(2.0), jnp.float32(50.0))
    return _fs_quant_sum(a, v_max) * s


def _spike_ln_kernel(x_ref, gamma_ref, beta_ref, o_ref):
    x = x_ref[...]                                             # (R, N) fp32 rows
    n = x.shape[-1]
    inv_n = jnp.float32(1.0 / n)
    mean = jnp.sum(x, axis=-1, keepdims=True) * inv_n          # == x @ W_rmvmean
    centered = x - mean
    cq = _oatn_precise(centered)                               # spike-coded, K-sum fused
    var = jnp.sum(cq * cq, axis=-1, keepdims=True) * inv_n     # get_squre(...) @ W_var
    # TODO(synk): get_sqr / invert_tensor_precise / SNNMACOperater are not defined in the
    # spec; their summed spike reconstructions collapse to sqrt, reciprocal and an
    # elementwise multiply-accumulate over the K spike steps.
    inv = 1.0 / jnp.sqrt(var)
    prod = cq * inv                                            # SNNMACOperater
    pq = _oatn2_precise(prod)
    o_ref[...] = pq * gamma_ref[...] + beta_ref[...]


def spike_ln(x, gamma, beta, *, row_block=None, vmem_limit_bytes=32 * 1024 * 1024):
    """Fused spikeLN forward. x: (..., N), gamma/beta: (N,). Returns float32 (..., N)."""
    n = x.shape[-1]
    lead_shape = x.shape[:-1]
    # flatten of the leading dims is a free metadata reshape — no copy kernel.
    x2 = jnp.reshape(x, (-1, n)).astype(jnp.float32)
    rows = x2.shape[0]

    if row_block is None:
        target_bytes = 4 * 1024 * 1024                         # multi-MiB lane-dense blocks
        rb = min(1024, max(8, target_bytes // max(1, n * 4)))
        rb = (rb // 8) * 8
        row_block = min(rb, ((rows + 7) // 8) * 8)

    padded_rows = pl.cdiv(rows, row_block) * row_block
    if padded_rows != rows:
        x2 = jnp.pad(x2, ((0, padded_rows - rows), (0, 0)))

    gamma2 = jnp.reshape(gamma, (1, n)).astype(jnp.float32)
    beta2 = jnp.reshape(beta, (1, n)).astype(jnp.float32)

    out = pl.pallas_call(
        _spike_ln_kernel,
        out_shape=jax.ShapeDtypeStruct((padded_rows, n), jnp.float32),
        grid_spec=pltpu.PrefetchScalarGridSpec(
            num_scalar_prefetch=0,
            grid=(padded_rows // row_block,),
            in_specs=[
                pl.BlockSpec((row_block, n), lambda i: (i, 0)),
                pl.BlockSpec((1, n), lambda i: (0, 0)),
                pl.BlockSpec((1, n), lambda i: (0, 0)),
            ],
            out_specs=pl.BlockSpec((row_block, n), lambda i: (i, 0)),
        ),
        compiler_params=pltpu.CompilerParams(
            dimension_semantics=("parallel",),     # independent rows → shard across TCs (v7x)
            vmem_limit_bytes=vmem_limit_bytes,
        ),
    )(x2, gamma2, beta2)

    out = out[:rows]
    return jnp.reshape(out, lead_shape + (n,))


def _reference_spike_ln(x, gamma, beta):
    """Pure-JAX mirror of the PyTorch spikeLN forward (keeps the W_rmvmean/W_var matmuls)."""
    xf = x.astype(jnp.float32)
    n = xf.shape[-1]
    w_rm = jnp.full((n, n), -1.0 / n, jnp.float32)
    w_rm = w_rm.at[jnp.arange(n), jnp.arange(n)].set(1.0 - 1.0 / n)
    w_var = jnp.full((n, 1), 1.0 / n, jnp.float32)
    rmv = jnp.matmul(xf, w_rm, precision=jax.lax.Precision.HIGHEST)
    cq = _oatn_precise(rmv)
    var = jnp.matmul(cq * cq, w_var, precision=jax.lax.Precision.HIGHEST)
    inv = 1.0 / jnp.sqrt(var)
    prod = cq * inv
    pq = _oatn2_precise(prod)
    return pq * gamma.astype(jnp.float32) + beta.astype(jnp.float32)


if __name__ == "__main__":
    key = jax.random.PRNGKey(0)
    kx, kg, kb = jax.random.split(key, 3)
    B, S, N = 2, 8, 128
    x = 2.0 * jax.random.normal(kx, (B, S, N), dtype=jnp.float32)
    gamma = 1.0 + 0.1 * jax.random.normal(kg, (N,), dtype=jnp.float32)
    beta = 0.1 * jax.random.normal(kb, (N,), dtype=jnp.float32)

    out = spike_ln(x, gamma, beta)
    out = jax.block_until_ready(out)

    ref = _reference_spike_ln(x, gamma, beta)
    assert out.shape == ref.shape == (B, S, N)
    assert out.dtype == jnp.float32
    # The spike (fs_coding) quantizers are step functions; tiny FP-ordering differences
    # (in-kernel reduction vs. reference matmul mean removal) can flip an element by one
    # quantization step (~1e-2), so allow that margin.
    max_diff = float(jnp.max(jnp.abs(out - ref)))
    assert max_diff < 5e-2, f"max abs diff {max_diff}"
    print("KERNEL_OK")
</pallas_src>

<mosaic_0001>
module attributes {stable_mosaic.version = 11 : i64} {
  func.func @_spike_ln_kernel(%arg0: i32, %arg1: memref<16x128xf32, #tpu.memory_space<vmem>>, %arg2: memref<1x128xf32, #tpu.memory_space<vmem>>, %arg3: memref<1x128xf32, #tpu.memory_space<vmem>>, %arg4: memref<16x128xf32, #tpu.memory_space<vmem>>) attributes {dimension_semantics = [#tpu.dimension_semantics<parallel>], iteration_bounds = array<i64: 1>, scalar_prefetch = 0 : i64, scratch_operands = 0 : i64, tpu.core_type = #tpu.core_type<tc>, window_params = [{transform_indices = @transform_0, window_bounds = array<i64: 16, 128>}, {pipeline_mode = #tpu.pipeline_mode<synchronous>, transform_indices = @transform_1, window_bounds = array<i64: 1, 128>}, {pipeline_mode = #tpu.pipeline_mode<synchronous>, transform_indices = @transform_2, window_bounds = array<i64: 1, 128>}, {transform_indices = @transform_3, window_bounds = array<i64: 16, 128>}]} {
    %c0 = arith.constant 0 : index
    %c0_0 = arith.constant 0 : index
    %0 = vector.load %arg1[%c0, %c0_0] : memref<16x128xf32, #tpu.memory_space<vmem>>, vector<16x128xf32>
    %cst = arith.constant dense<0.000000e+00> : vector<16xf32>
    %1 = vector.multi_reduction <add>, %0, %cst [1] : vector<16x128xf32> to vector<16xf32>
    %2 = vector.shape_cast %1 : vector<16xf32> to vector<16x1xf32>
    %cst_1 = arith.constant 7.812500e-03 : f32
    %3 = vector.broadcast %cst_1 : f32 to vector<16x1xf32>
    %4 = arith.mulf %2, %3 : vector<16x1xf32>
    %5 = vector.broadcast %4 : vector<16x1xf32> to vector<16x128xf32>
    %6 = arith.subf %0, %5 : vector<16x128xf32>
    %cst_2 = arith.constant -2.000000e+02 : f32
    %cst_3 = arith.constant 7.000000e+02 : f32
    %7 = vector.broadcast %cst_2 : f32 to vector<16x128xf32>
    %8 = arith.maximumf %7, %6 : vector<16x128xf32>
    %9 = vector.broadcast %cst_3 : f32 to vector<16x128xf32>
    %10 = arith.minimumf %9, %8 : vector<16x128xf32>
    %cst_4 = arith.constant 0.000000e+00 : f32
    %11 = vector.broadcast %cst_4 : f32 to vector<16x128xf32>
    %12 = arith.cmpf ogt, %10, %11 : vector<16x128xf32>
    %cst_5 = arith.constant 0.000000e+00 : f32
    %13 = vector.broadcast %cst_5 : f32 to vector<16x128xf32>
    %14 = arith.cmpf olt, %10, %13 : vector<16x128xf32>
    %cst_6 = arith.constant -1.000000e+00 : f32
    %cst_7 = arith.constant 0.000000e+00 : f32
    %15 = vector.broadcast %cst_6 : f32 to vector<16x128xf32>
    %16 = vector.broadcast %cst_7 : f32 to vector<16x128xf32>
    %17 = arith.select %14, %15, %16 : vector<16x128xi1>, vector<16x128xf32>
    %cst_8 = arith.constant 1.000000e+00 : f32
    %18 = vector.broadcast %cst_8 : f32 to vector<16x128xf32>
    %19 = arith.select %12, %18, %17 : vector<16x128xi1>, vector<16x128xf32>
    %20 = math.absf %10 : vector<16x128xf32>
    %cst_9 = arith.constant 0.000000e+00 : f32
    %21 = vector.broadcast %cst_9 : f32 to vector<16x128xf32>
    %22 = arith.cmpf oge, %10, %21 : vector<16x128xf32>
    %cst_10 = arith.constant 7.000000e+02 : f32
    %cst_11 = arith.constant 2.000000e+02 : f32
    %23 = vector.broadcast %cst_10 : f32 to vector<16x128xf32>
    %24 = vector.broadcast %cst_11 : f32 to vector<16x128xf32>
    %25 = arith.select %22, %23, %24 : vector<16x128xi1>, vector<16x128xf32>
    %cst_12 = arith.constant 0.000000e+00 : f32
    %26 = vector.broadcast %cst_12 : f32 to vector<16x128xf32>
    %cst_13 = arith.constant 5.000000e-01 : f32
    %27 = vector.broadcast %cst_13 : f32 to vector<16x128xf32>
    %28 = arith.mulf %25, %27 : vector<16x128xf32>
    %29 = arith.cmpf ogt, %20, %28 : vector<16x128xf32>
    %30 = arith.extui %29 : vector<16x128xi1> to vector<16x128xi32>
    %31 = arith.sitofp %30 : vector<16x128xi32> to vector<16x128xf32>
    %32 = arith.mulf %31, %28 : vector<16x128xf32>
    %33 = arith.addf %26, %32 : vector<16x128xf32>
    %34 = arith.subf %20, %32 : vector<16x128xf32>
    %cst_14 = arith.constant 2.500000e-01 : f32
    %35 = vector.broadcast %cst_14 : f32 to vector<16x128xf32>
    %36 = arith.mulf %25, %35 : vector<16x128xf32>
    %37 = arith.cmpf ogt, %34, %36 : vector<16x128xf32>
    %38 = arith.extui %37 : vector<16x128xi1> to vector<16x128xi32>
    %39 = arith.sitofp %38 : vector<16x128xi32> to vector<16x128xf32>
    %40 = arith.mulf %39, %36 : vector<16x128xf32>
    %41 = arith.addf %33, %40 : vector<16x128xf32>
    %42 = arith.subf %34, %40 : vector<16x128xf32>
    %cst_15 = arith.constant 1.250000e-01 : f32
    %43 = vector.broadcast %cst_15 : f32 to vector<16x128xf32>
    %44 = arith.mulf %25, %43 : vector<16x128xf32>
    %45 = arith.cmpf ogt, %42, %44 : vector<16x128xf32>
    %46 = arith.extui %45 : vector<16x128xi1> to vector<16x128xi32>
    %47 = arith.sitofp %46 : vector<16x128xi32> to vector<16x128xf32>
    %48 = arith.mulf %47, %44 : vector<16x128xf32>
    %49 = arith.addf %41, %48 : vector<16x128xf32>
    %50 = arith.subf %42, %48 : vector<16x128xf32>
    %cst_16 = arith.constant 6.250000e-02 : f32
    %51 = vector.broadcast %cst_16 : f32 to vector<16x128xf32>
    %52 = arith.mulf %25, %51 : vector<16x128xf32>
    %53 = arith.cmpf ogt, %50, %52 : vector<16x128xf32>
    %54 = arith.extui %53 : vector<16x128xi1> to vector<16x128xi32>
    %55 = arith.sitofp %54 : vector<16x128xi32> to vector<16x128xf32>
    %56 = arith.mulf %55, %52 : vector<16x128xf32>
    %57 = arith.addf %49, %56 : vector<16x128xf32>
    %58 = arith.subf %50, %56 : vector<16x128xf32>
    %cst_17 = arith.constant 3.125000e-02 : f32
    %59 = vector.broadcast %cst_17 : f32 to vector<16x128xf32>
    %60 = arith.mulf %25, %59 : vector<16x128xf32>
    %61 = arith.cmpf ogt, %58, %60 : vector<16x128xf32>
    %62 = arith.extui %61 : vector<16x128xi1> to vector<16x128xi32>
    %63 = arith.sitofp %62 : vector<16x128xi32> to vector<16x128xf32>
    %64 = arith.mulf %63, %60 : vector<16x128xf32>
    %65 = arith.addf %57, %64 : vector<16x128xf32>
    %66 = arith.subf %58, %64 : vector<16x128xf32>
    %cst_18 = arith.constant 1.562500e-02 : f32
    %67 = vector.broadcast %cst_18 : f32 to vector<16x128xf32>
    %68 = arith.mulf %25, %67 : vector<16x128xf32>
    %69 = arith.cmpf ogt, %66, %68 : vector<16x128xf32>
    %70 = arith.extui %69 : vector<16x128xi1> to vector<16x128xi32>
    %71 = arith.sitofp %70 : vector<16x128xi32> to vector<16x128xf32>
    %72 = arith.mulf %71, %68 : vector<16x128xf32>
    %73 = arith.addf %65, %72 : vector<16x128xf32>
    %74 = arith.subf %66, %72 : vector<16x128xf32>
    %cst_19 = arith.constant 7.812500e-03 : f32
    %75 = vector.broadcast %cst_19 : f32 to vector<16x128xf32>
    %76 = arith.mulf %25, %75 : vector<16x128xf32>
    %77 = arith.cmpf ogt, %74, %76 : vector<16x128xf32>
    %78 = arith.extui %77 : vector<16x128xi1> to vector<16x128xi32>
    %79 = arith.sitofp %78 : vector<16x128xi32> to vector<16x128xf32>
    %80 = arith.mulf %79, %76 : vector<16x128xf32>
    %81 = arith.addf %73, %80 : vector<16x128xf32>
    %82 = arith.subf %74, %80 : vector<16x128xf32>
    %cst_20 = arith.constant 3.906250e-03 : f32
    %83 = vector.broadcast %cst_20 : f32 to vector<16x128xf32>
    %84 = arith.mulf %25, %83 : vector<16x128xf32>
    %85 = arith.cmpf ogt, %82, %84 : vector<16x128xf32>
    %86 = arith.extui %85 : vector<16x128xi1> to vector<16x128xi32>
    %87 = arith.sitofp %86 : vector<16x128xi32> to vector<16x128xf32>
    %88 = arith.mulf %87, %84 : vector<16x128xf32>
    %89 = arith.addf %81, %88 : vector<16x128xf32>
    %90 = arith.subf %82, %88 : vector<16x128xf32>
    %cst_21 = arith.constant 0.001953125 : f32
    %91 = vector.broadcast %cst_21 : f32 to vector<16x128xf32>
    %92 = arith.mulf %25, %91 : vector<16x128xf32>
    %93 = arith.cmpf ogt, %90, %92 : vector<16x128xf32>
    %94 = arith.extui %93 : vector<16x128xi1> to vector<16x128xi32>
    %95 = arith.sitofp %94 : vector<16x128xi32> to vector<16x128xf32>
    %96 = arith.mulf %95, %92 : vector<16x128xf32>
    %97 = arith.addf %89, %96 : vector<16x128xf32>
    %98 = arith.subf %90, %96 : vector<16x128xf32>
    %cst_22 = arith.constant 9.765625E-4 : f32
    %99 = vector.broadcast %cst_22 : f32 to vector<16x128xf32>
    %100 = arith.mulf %25, %99 : vector<16x128xf32>
    %101 = arith.cmpf ogt, %98, %100 : vector<16x128xf32>
    %102 = arith.extui %101 : vector<16x128xi1> to vector<16x128xi32>
    %103 = arith.sitofp %102 : vector<16x128xi32> to vector<16x128xf32>
    %104 = arith.mulf %103, %100 : vector<16x128xf32>
    %105 = arith.addf %97, %104 : vector<16x128xf32>
    %106 = arith.subf %98, %104 : vector<16x128xf32>
    %cst_23 = arith.constant 4.8828125E-4 : f32
    %107 = vector.broadcast %cst_23 : f32 to vector<16x128xf32>
    %108 = arith.mulf %25, %107 : vector<16x128xf32>
    %109 = arith.cmpf ogt, %106, %108 : vector<16x128xf32>
    %110 = arith.extui %109 : vector<16x128xi1> to vector<16x128xi32>
    %111 = arith.sitofp %110 : vector<16x128xi32> to vector<16x128xf32>
    %112 = arith.mulf %111, %108 : vector<16x128xf32>
    %113 = arith.addf %105, %112 : vector<16x128xf32>
    %114 = arith.subf %106, %112 : vector<16x128xf32>
    %cst_24 = arith.constant 2.44140625E-4 : f32
    %115 = vector.broadcast %cst_24 : f32 to vector<16x128xf32>
    %116 = arith.mulf %25, %115 : vector<16x128xf32>
    %117 = arith.cmpf ogt, %114, %116 : vector<16x128xf32>
    %118 = arith.extui %117 : vector<16x128xi1> to vector<16x128xi32>
    %119 = arith.sitofp %118 : vector<16x128xi32> to vector<16x128xf32>
    %120 = arith.mulf %119, %116 : vector<16x128xf32>
    %121 = arith.addf %113, %120 : vector<16x128xf32>
    %122 = arith.subf %114, %120 : vector<16x128xf32>
    %cst_25 = arith.constant 1.22070313E-4 : f32
    %123 = vector.broadcast %cst_25 : f32 to vector<16x128xf32>
    %124 = arith.mulf %25, %123 : vector<16x128xf32>
    %125 = arith.cmpf ogt, %122, %124 : vector<16x128xf32>
    %126 = arith.extui %125 : vector<16x128xi1> to vector<16x128xi32>
    %127 = arith.sitofp %126 : vector<16x128xi32> to vector<16x128xf32>
    %128 = arith.mulf %127, %124 : vector<16x128xf32>
    %129 = arith.addf %121, %128 : vector<16x128xf32>
    %130 = arith.subf %122, %128 : vector<16x128xf32>
    %cst_26 = arith.constant 6.10351563E-5 : f32
    %131 = vector.broadcast %cst_26 : f32 to vector<16x128xf32>
    %132 = arith.mulf %25, %131 : vector<16x128xf32>
    %133 = arith.cmpf ogt, %130, %132 : vector<16x128xf32>
    %134 = arith.extui %133 : vector<16x128xi1> to vector<16x128xi32>
    %135 = arith.sitofp %134 : vector<16x128xi32> to vector<16x128xf32>
    %136 = arith.mulf %135, %132 : vector<16x128xf32>
    %137 = arith.addf %129, %136 : vector<16x128xf32>
    %138 = arith.subf %130, %136 : vector<16x128xf32>
    %cst_27 = arith.constant 3.05175781E-5 : f32
    %139 = vector.broadcast %cst_27 : f32 to vector<16x128xf32>
    %140 = arith.mulf %25, %139 : vector<16x128xf32>
    %141 = arith.cmpf ogt, %138, %140 : vector<16x128xf32>
    %142 = arith.extui %141 : vector<16x128xi1> to vector<16x128xi32>
    %143 = arith.sitofp %142 : vector<16x128xi32> to vector<16x128xf32>
    %144 = arith.mulf %143, %140 : vector<16x128xf32>
    %145 = arith.addf %137, %144 : vector<16x128xf32>
    %146 = arith.subf %138, %144 : vector<16x128xf32>
    %cst_28 = arith.constant 1.52587891E-5 : f32
    %147 = vector.broadcast %cst_28 : f32 to vector<16x128xf32>
    %148 = arith.mulf %25, %147 : vector<16x128xf32>
    %149 = arith.cmpf ogt, %146, %148 : vector<16x128xf32>
    %150 = arith.extui %149 : vector<16x128xi1> to vector<16x128xi32>
    %151 = arith.sitofp %150 : vector<16x128xi32> to vector<16x128xf32>
    %152 = arith.mulf %151, %148 : vector<16x128xf32>
    %153 = arith.addf %145, %152 : vector<16x128xf32>
    %154 = arith.mulf %153, %19 : vector<16x128xf32>
    %155 = arith.mulf %154, %154 : vector<16x128xf32>
    %cst_29 = arith.constant dense<0.000000e+00> : vector<16xf32>
    %156 = vector.multi_reduction <add>, %155, %cst_29 [1] : vector<16x128xf32> to vector<16xf32>
    %157 = vector.shape_cast %156 : vector<16xf32> to vector<16x1xf32>
    %cst_30 = arith.constant 7.812500e-03 : f32
    %158 = vector.broadcast %cst_30 : f32 to vector<16x1xf32>
    %159 = arith.mulf %157, %158 : vector<16x1xf32>
    %160 = math.sqrt %159 : vector<16x1xf32>
    %cst_31 = arith.constant 1.000000e+00 : f32
    %161 = vector.broadcast %cst_31 : f32 to vector<16x1xf32>
    %162 = arith.divf %161, %160 : vector<16x1xf32>
    %163 = vector.broadcast %162 : vector<16x1xf32> to vector<16x128xf32>
    %164 = arith.mulf %154, %163 : vector<16x128xf32>
    %cst_32 = arith.constant -5.000000e+01 : f32
    %cst_33 = arith.constant 5.000000e+01 : f32
    %165 = vector.broadcast %cst_32 : f32 to vector<16x128xf32>
    %166 = arith.maximumf %165, %164 : vector<16x128xf32>
    %167 = vector.broadcast %cst_33 : f32 to vector<16x128xf32>
    %168 = arith.minimumf %167, %166 : vector<16x128xf32>
    %cst_34 = arith.constant 0.000000e+00 : f32
    %169 = vector.broadcast %cst_34 : f32 to vector<16x128xf32>
    %170 = arith.cmpf ogt, %168, %169 : vector<16x128xf32>
    %cst_35 = arith.constant 0.000000e+00 : f32
    %171 = vector.broadcast %cst_35 : f32 to vector<16x128xf32>
    %172 = arith.cmpf olt, %168, %171 : vector<16x128xf32>
    %cst_36 = arith.constant -1.000000e+00 : f32
    %cst_37 = arith.constant 0.000000e+00 : f32
    %173 = vector.broadcast %cst_36 : f32 to vector<16x128xf32>
    %174 = vector.broadcast %cst_37 : f32 to vector<16x128xf32>
    %175 = arith.select %172, %173, %174 : vector<16x128xi1>, vector<16x128xf32>
    %cst_38 = arith.constant 1.000000e+00 : f32
    %176 = vector.broadcast %cst_38 : f32 to vector<16x128xf32>
    %177 = arith.select %170, %176, %175 : vector<16x128xi1>, vector<16x128xf32>
    %178 = math.absf %168 : vector<16x128xf32>
    %cst_39 = arith.constant 2.000000e+00 : f32
    %179 = vector.broadcast %cst_39 : f32 to vector<16x128xf32>
    %180 = arith.cmpf olt, %178, %179 : vector<16x128xf32>
    %cst_40 = arith.constant 2.000000e+00 : f32
    %cst_41 = arith.constant 5.000000e+01 : f32
    %181 = vector.broadcast %cst_40 : f32 to vector<16x128xf32>
    %182 = vector.broadcast %cst_41 : f32 to vector<16x128xf32>
    %183 = arith.select %180, %181, %182 : vector<16x128xi1>, vector<16x128xf32>
    %cst_42 = arith.constant 0.000000e+00 : f32
    %184 = vector.broadcast %cst_42 : f32 to vector<16x128xf32>
    %cst_43 = arith.constant 5.000000e-01 : f32
    %185 = vector.broadcast %cst_43 : f32 to vector<16x128xf32>
    %186 = arith.mulf %183, %185 : vector<16x128xf32>
    %187 = arith.cmpf ogt, %178, %186 : vector<16x128xf32>
    %188 = arith.extui %187 : vector<16x128xi1> to vector<16x128xi32>
    %189 = arith.sitofp %188 : vector<16x128xi32> to vector<16x128xf32>
    %190 = arith.mulf %189, %186 : vector<16x128xf32>
    %191 = arith.addf %184, %190 : vector<16x128xf32>
    %192 = arith.subf %178, %190 : vector<16x128xf32>
    %cst_44 = arith.constant 2.500000e-01 : f32
    %193 = vector.broadcast %cst_44 : f32 to vector<16x128xf32>
    %194 = arith.mulf %183, %193 : vector<16x128xf32>
    %195 = arith.cmpf ogt, %192, %194 : vector<16x128xf32>
    %196 = arith.extui %195 : vector<16x128xi1> to vector<16x128xi32>
    %197 = arith.sitofp %196 : vector<16x128xi32> to vector<16x128xf32>
    %198 = arith.mulf %197, %194 : vector<16x128xf32>
    %199 = arith.addf %191, %198 : vector<16x128xf32>
    %200 = arith.subf %192, %198 : vector<16x128xf32>
    %cst_45 = arith.constant 1.250000e-01 : f32
    %201 = vector.broadcast %cst_45 : f32 to vector<16x128xf32>
    %202 = arith.mulf %183, %201 : vector<16x128xf32>
    %203 = arith.cmpf ogt, %200, %202 : vector<16x128xf32>
    %204 = arith.extui %203 : vector<16x128xi1> to vector<16x128xi32>
    %205 = arith.sitofp %204 : vector<16x128xi32> to vector<16x128xf32>
    %206 = arith.mulf %205, %202 : vector<16x128xf32>
    %207 = arith.addf %199, %206 : vector<16x128xf32>
    %208 = arith.subf %200, %206 : vector<16x128xf32>
    %cst_46 = arith.constant 6.250000e-02 : f32
    %209 = vector.broadcast %cst_46 : f32 to vector<16x128xf32>
    %210 = arith.mulf %183, %209 : vector<16x128xf32>
    %211 = arith.cmpf ogt, %208, %210 : vector<16x128xf32>
    %212 = arith.extui %211 : vector<16x128xi1> to vector<16x128xi32>
    %213 = arith.sitofp %212 : vector<16x128xi32> to vector<16x128xf32>
    %214 = arith.mulf %213, %210 : vector<16x128xf32>
    %215 = arith.addf %207, %214 : vector<16x128xf32>
    %216 = arith.subf %208, %214 : vector<16x128xf32>
    %cst_47 = arith.constant 3.125000e-02 : f32
    %217 = vector.broadcast %cst_47 : f32 to vector<16x128xf32>
    %218 = arith.mulf %183, %217 : vector<16x128xf32>
    %219 = arith.cmpf ogt, %216, %218 : vector<16x128xf32>
    %220 = arith.extui %219 : vector<16x128xi1> to vector<16x128xi32>
    %221 = arith.sitofp %220 : vector<16x128xi32> to vector<16x128xf32>
    %222 = arith.mulf %221, %218 : vector<16x128xf32>
    %223 = arith.addf %215, %222 : vector<16x128xf32>
    %224 = arith.subf %216, %222 : vector<16x128xf32>
    %cst_48 = arith.constant 1.562500e-02 : f32
    %225 = vector.broadcast %cst_48 : f32 to vector<16x128xf32>
    %226 = arith.mulf %183, %225 : vector<16x128xf32>
    %227 = arith.cmpf ogt, %224, %226 : vector<16x128xf32>
    %228 = arith.extui %227 : vector<16x128xi1> to vector<16x128xi32>
    %229 = arith.sitofp %228 : vector<16x128xi32> to vector<16x128xf32>
    %230 = arith.mulf %229, %226 : vector<16x128xf32>
    %231 = arith.addf %223, %230 : vector<16x128xf32>
    %232 = arith.subf %224, %230 : vector<16x128xf32>
    %cst_49 = arith.constant 7.812500e-03 : f32
    %233 = vector.broadcast %cst_49 : f32 to vector<16x128xf32>
    %234 = arith.mulf %183, %233 : vector<16x128xf32>
    %235 = arith.cmpf ogt, %232, %234 : vector<16x128xf32>
    %236 = arith.extui %235 : vector<16x128xi1> to vector<16x128xi32>
    %237 = arith.sitofp %236 : vector<16x128xi32> to vector<16x128xf32>
    %238 = arith.mulf %237, %234 : vector<16x128xf32>
    %239 = arith.addf %231, %238 : vector<16x128xf32>
    %240 = arith.subf %232, %238 : vector<16x128xf32>
    %cst_50 = arith.constant 3.906250e-03 : f32
    %241 = vector.broadcast %cst_50 : f32 to vector<16x128xf32>
    %242 = arith.mulf %183, %241 : vector<16x128xf32>
    %243 = arith.cmpf ogt, %240, %242 : vector<16x128xf32>
    %244 = arith.extui %243 : vector<16x128xi1> to vector<16x128xi32>
    %245 = arith.sitofp %244 : vector<16x128xi32> to vector<16x128xf32>
    %246 = arith.mulf %245, %242 : vector<16x128xf32>
    %247 = arith.addf %239, %246 : vector<16x128xf32>
    %248 = arith.subf %240, %246 : vector<16x128xf32>
    %cst_51 = arith.constant 0.001953125 : f32
    %249 = vector.broadcast %cst_51 : f32 to vector<16x128xf32>
    %250 = arith.mulf %183, %249 : vector<16x128xf32>
    %251 = arith.cmpf ogt, %248, %250 : vector<16x128xf32>
    %252 = arith.extui %251 : vector<16x128xi1> to vector<16x128xi32>
    %253 = arith.sitofp %252 : vector<16x128xi32> to vector<16x128xf32>
    %254 = arith.mulf %253, %250 : vector<16x128xf32>
    %255 = arith.addf %247, %254 : vector<16x128xf32>
    %256 = arith.subf %248, %254 : vector<16x128xf32>
    %cst_52 = arith.constant 9.765625E-4 : f32
    %257 = vector.broadcast %cst_52 : f32 to vector<16x128xf32>
    %258 = arith.mulf %183, %257 : vector<16x128xf32>
    %259 = arith.cmpf ogt, %256, %258 : vector<16x128xf32>
    %260 = arith.extui %259 : vector<16x128xi1> to vector<16x128xi32>
    %261 = arith.sitofp %260 : vector<16x128xi32> to vector<16x128xf32>
    %262 = arith.mulf %261, %258 : vector<16x128xf32>
    %263 = arith.addf %255, %262 : vector<16x128xf32>
    %264 = arith.subf %256, %262 : vector<16x128xf32>
    %cst_53 = arith.constant 4.8828125E-4 : f32
    %265 = vector.broadcast %cst_53 : f32 to vector<16x128xf32>
    %266 = arith.mulf %183, %265 : vector<16x128xf32>
    %267 = arith.cmpf ogt, %264, %266 : vector<16x128xf32>
    %268 = arith.extui %267 : vector<16x128xi1> to vector<16x128xi32>
    %269 = arith.sitofp %268 : vector<16x128xi32> to vector<16x128xf32>
    %270 = arith.mulf %269, %266 : vector<16x128xf32>
    %271 = arith.addf %263, %270 : vector<16x128xf32>
    %272 = arith.subf %264, %270 : vector<16x128xf32>
    %cst_54 = arith.constant 2.44140625E-4 : f32
    %273 = vector.broadcast %cst_54 : f32 to vector<16x128xf32>
    %274 = arith.mulf %183, %273 : vector<16x128xf32>
    %275 = arith.cmpf ogt, %272, %274 : vector<16x128xf32>
    %276 = arith.extui %275 : vector<16x128xi1> to vector<16x128xi32>
    %277 = arith.sitofp %276 : vector<16x128xi32> to vector<16x128xf32>
    %278 = arith.mulf %277, %274 : vector<16x128xf32>
    %279 = arith.addf %271, %278 : vector<16x128xf32>
    %280 = arith.subf %272, %278 : vector<16x128xf32>
    %cst_55 = arith.constant 1.22070313E-4 : f32
    %281 = vector.broadcast %cst_55 : f32 to vector<16x128xf32>
    %282 = arith.mulf %183, %281 : vector<16x128xf32>
    %283 = arith.cmpf ogt, %280, %282 : vector<16x128xf32>
    %284 = arith.extui %283 : vector<16x128xi1> to vector<16x128xi32>
    %285 = arith.sitofp %284 : vector<16x128xi32> to vector<16x128xf32>
    %286 = arith.mulf %285, %282 : vector<16x128xf32>
    %287 = arith.addf %279, %286 : vector<16x128xf32>
    %288 = arith.subf %280, %286 : vector<16x128xf32>
    %cst_56 = arith.constant 6.10351563E-5 : f32
    %289 = vector.broadcast %cst_56 : f32 to vector<16x128xf32>
    %290 = arith.mulf %183, %289 : vector<16x128xf32>
    %291 = arith.cmpf ogt, %288, %290 : vector<16x128xf32>
    %292 = arith.extui %291 : vector<16x128xi1> to vector<16x128xi32>
    %293 = arith.sitofp %292 : vector<16x128xi32> to vector<16x128xf32>
    %294 = arith.mulf %293, %290 : vector<16x128xf32>
    %295 = arith.addf %287, %294 : vector<16x128xf32>
    %296 = arith.subf %288, %294 : vector<16x128xf32>
    %cst_57 = arith.constant 3.05175781E-5 : f32
    %297 = vector.broadcast %cst_57 : f32 to vector<16x128xf32>
    %298 = arith.mulf %183, %297 : vector<16x128xf32>
    %299 = arith.cmpf ogt, %296, %298 : vector<16x128xf32>
    %300 = arith.extui %299 : vector<16x128xi1> to vector<16x128xi32>
    %301 = arith.sitofp %300 : vector<16x128xi32> to vector<16x128xf32>
    %302 = arith.mulf %301, %298 : vector<16x128xf32>
    %303 = arith.addf %295, %302 : vector<16x128xf32>
    %304 = arith.subf %296, %302 : vector<16x128xf32>
    %cst_58 = arith.constant 1.52587891E-5 : f32
    %305 = vector.broadcast %cst_58 : f32 to vector<16x128xf32>
    %306 = arith.mulf %183, %305 : vector<16x128xf32>
    %307 = arith.cmpf ogt, %304, %306 : vector<16x128xf32>
    %308 = arith.extui %307 : vector<16x128xi1> to vector<16x128xi32>
    %309 = arith.sitofp %308 : vector<16x128xi32> to vector<16x128xf32>
    %310 = arith.mulf %309, %306 : vector<16x128xf32>
    %311 = arith.addf %303, %310 : vector<16x128xf32>
    %312 = arith.mulf %311, %177 : vector<16x128xf32>
    %c0_59 = arith.constant 0 : index
    %c0_60 = arith.constant 0 : index
    %313 = vector.load %arg2[%c0_59, %c0_60] : memref<1x128xf32, #tpu.memory_space<vmem>>, vector<1x128xf32>
    %314 = vector.broadcast %313 : vector<1x128xf32> to vector<16x128xf32>
    %315 = arith.mulf %312, %314 : vector<16x128xf32>
    %c0_61 = arith.constant 0 : index
    %c0_62 = arith.constant 0 : index
    %316 = vector.load %arg3[%c0_61, %c0_62] : memref<1x128xf32, #tpu.memory_space<vmem>>, vector<1x128xf32>
    %317 = vector.broadcast %316 : vector<1x128xf32> to vector<16x128xf32>
    %318 = arith.addf %315, %317 : vector<16x128xf32>
    %c0_63 = arith.constant 0 : index
    %c0_64 = arith.constant 0 : index
    %319 = vector.load %arg4[%c0_63, %c0_64] : memref<16x128xf32, #tpu.memory_space<vmem>>, vector<16x128xf32>
    tpu.vector_store %arg4[%c0_63, %c0_64], %318 {strides = array<i32>} : memref<16x128xf32, #tpu.memory_space<vmem>>, vector<16x128xf32>,
    return
  }
  func.func @transform_0(%arg0: i32) -> (i32, i32) {
    %c0_i32 = arith.constant 0 : i32
    %c0_i32_0 = arith.constant 0 : i32
    return %arg0, %c0_i32 : i32, i32
  }
  func.func @transform_1(%arg0: i32) -> (i32, i32) {
    %c0_i32 = arith.constant 0 : i32
    %c0_i32_0 = arith.constant 0 : i32
    %c0_i32_1 = arith.constant 0 : i32
    return %c0_i32, %c0_i32_0 : i32, i32
  }
  func.func @transform_2(%arg0: i32) -> (i32, i32) {
    %c0_i32 = arith.constant 0 : i32
    %c0_i32_0 = arith.constant 0 : i32
    %c0_i32_1 = arith.constant 0 : i32
    return %c0_i32, %c0_i32_0 : i32, i32
  }
  func.func @transform_3(%arg0: i32) -> (i32, i32) {
    %c0_i32 = arith.constant 0 : i32
    %c0_i32_0 = arith.constant 0 : i32
    return %arg0, %c0_i32 : i32, i32
  }
}

</mosaic_0001>

<llo_original>
// kernel: tpu_custom_call.1
$region0: #{tpu_custom_call.1}
  #allocation0 [shape = 'u32[]', space=smem, size = 0x4, offset = 0x4, fixed_abs, tag = 'smem constant byte address 0x4 - core index']
  #allocation1 [shape = 'u32[144,128]{1,0:T(1,128)}', space=vmem, size = 0x12000, scoped, tag = 'internal scratch']
  %s0 = inlined_call_operand.hbm [shape: f32[16,128], index: 0, kind: input, shape index: {}]
  %s1 = inlined_call_operand.vmem [shape: f32[1,128], index: 1, kind: input, shape index: {}]
  %s2 = inlined_call_operand.vmem [shape: f32[1,128], index: 2, kind: input, shape index: {}]
  %s3 = inlined_call_operand.hbm [shape: f32[16,128], index: 3, kind: output, shape index: {}]
  %s4 = sld [smem:[#allocation0]]
  $region26: #{tpu_custom_call.1} parent=0
    _
  %s6 = ssub.s32 1, %s4
  %s7 = scalar_select 0, %s6, %s4
  $region1: #{tpu_custom_call.1} parent=0
    #allocation2 [shape = 'u8[8192]{0}', space=vmem, size = 0x2000, scoped, tag = 'input window, operand 0, single buffered']
    #allocation3 [shape = 's32[1]{0}', space=sflag, size = 0x4, scoped, tag = 'scoped memory for tpu_custom_call.1']
    #allocation4 [shape = 's32[1]{0}', space=sflag, size = 0x4, scoped, tag = 'scoped memory for tpu_custom_call.1']
    #allocation5 [shape = 'u8[8192]{0}', space=vmem, size = 0x2000, scoped, tag = 'output window, operand 0, single buffered']
    %8 = vsyncpa [#allocation3], 0
    %9 = vsyncpa [#allocation4], 0
    // Predicated region
    $region2: #{tpu_custom_call.1} parent=1 // pred_check
      _
    $region3: #{tpu_custom_call.1} parent=1 // pred_check_branch
      %11 = sbr.rel (0) target = $region5
    $region4: #{tpu_custom_call.1} parent=1 // pred_region
      %s13 = ssub.s32 256, 256
      %14 = vsyncadd [#allocation3], %s13
      %s15 = sshll.u32 [#allocation2], 4
      %s16 = int_to_ptr.vmem [resolvable:$true] %s15
      %21 = dma.hbm_to_vmem [thread:$0]  %s0, 256, %s16, [#allocation3], 128, 128, 8
    $region5: #{tpu_custom_call.1} parent=1 // pred_fallthru
      _
    // Predicated region
    $region6: #{tpu_custom_call.1} parent=1 // pred_check
      _
    $region7: #{tpu_custom_call.1} parent=1 // pred_check_branch
      %23 = sbr.rel (0) target = $region9
    $region8: #{tpu_custom_call.1} parent=1 // pred_region
      _
    $region9: #{tpu_custom_call.1} parent=1 // pred_fallthru
      _
    // Predicated region
    $region10: #{tpu_custom_call.1} parent=1 // pred_check
      _
    $region11: #{tpu_custom_call.1} parent=1 // pred_check_branch
      %25 = sbr.rel (0) target = $region13
    $region12: #{tpu_custom_call.1} parent=1 // pred_region
      _
    $region13: #{tpu_custom_call.1} parent=1 // pred_fallthru
      _
    // Predicated region
    $region14: #{tpu_custom_call.1} parent=1 // pred_check
      _
    $region15: #{tpu_custom_call.1} parent=1 // pred_check_branch
      %27 = sbr.rel (0) target = $region17
    $region16: #{tpu_custom_call.1} parent=1 // pred_region
      %28 = dma.done [#allocation3], 256
    $region17: #{tpu_custom_call.1} parent=1 // pred_fallthru
      _
    %v29 = vld [vmem:[#allocation2] sm:$0xff]
    %v30 = vld [vmem:[#allocation2 + $0x8] sm:$0xff]
    %31 = vadd.xlane.f32.xlu0 %v29
    %v32 = vpop.xlane.xlu0 %31
    %33 = vadd.xlane.f32.xlu0 %v30
    %v34 = vpop.xlane.xlu0 %33
    %v35 = vmul.f32 %v32, 0.0078125
    %v36 = vmul.f32 %v34, 0.0078125
    %v37 = vsub.f32 %v29, %v35
    %v38 = vsub.f32 %v30, %v36
    %v39 = vmax.f32 %v37, -200.0
    %v40 = vmax.f32 %v38, -200.0
    %v41 = vmin.f32 %v39, 700.0
    %v42 = vmin.f32 %v40, 700.0
    %vm43 = vcmp.gt.f32.partialorder %v41, 0.0
    %vm44 = vcmp.gt.f32.partialorder %v42, 0.0
    %vm45 = vcmp.lt.f32.partialorder %v41, 0.0
    %vm46 = vcmp.lt.f32.partialorder %v42, 0.0
    %v47 = vsel %vm45, -1.0, 0.0
    %v48 = vsel %vm46, -1.0, 0.0
    %v49 = vsel %vm43, 1.0, %v47
    %v50 = vsel %vm44, 1.0, %v48
    %v51 = vand.u32 2147483647, %v41
    %v52 = vand.u32 2147483647, %v42
    %vm53 = vcmp.ge.f32.partialorder %v41, 0.0
    %vm54 = vcmp.ge.f32.partialorder %v42, 0.0
    %v55 = vsel %vm53, 700.0, 200.0
    %v56 = vsel %vm54, 700.0, 200.0
    %v57 = vmul.f32 %v55, 0.5
    %v58 = vmul.f32 %v56, 0.5
    %vm59 = vcmp.gt.f32.partialorder %v51, %v57
    %vm60 = vcmp.gt.f32.partialorder %v52, %v58
    %v61 = vsel %vm59, 1, 0
    %v62 = vsel %vm60, 1, 0
    %v63 = vcvt.s32.f32 %v61
    %v64 = vcvt.s32.f32 %v62
    %v65 = vmul.f32 %v63, %v57
    %v66 = vmul.f32 %v64, %v58
    %v67 = vadd.f32 %v65, 0.0
    %v68 = vadd.f32 %v66, 0.0
    %v69 = vsub.f32 %v51, %v65
    %v70 = vsub.f32 %v52, %v66
    %v71 = vmul.f32 %v55, 0.25
    %v72 = vmul.f32 %v56, 0.25
    %vm73 = vcmp.gt.f32.partialorder %v69, %v71
    %vm74 = vcmp.gt.f32.partialorder %v70, %v72
    %v75 = vsel %vm73, 1, 0
    %v76 = vsel %vm74, 1, 0
    %v77 = vcvt.s32.f32 %v75
    %v78 = vcvt.s32.f32 %v76
    %v79 = vmul.f32 %v77, %v71
    %v80 = vmul.f32 %v78, %v72
    %v81 = vadd.f32 %v67, %v79
    %v82 = vadd.f32 %v68, %v80
    %v83 = vsub.f32 %v69, %v79
    %v84 = vsub.f32 %v70, %v80
    %v85 = vmul.f32 %v55, 0.125
    %v86 = vmul.f32 %v56, 0.125
    %vm87 = vcmp.gt.f32.partialorder %v83, %v85
    %vm88 = vcmp.gt.f32.partialorder %v84, %v86
    %v89 = vsel %vm87, 1, 0
    %v90 = vsel %vm88, 1, 0
    %v91 = vcvt.s32.f32 %v89
    %v92 = vcvt.s32.f32 %v90
    %v93 = vmul.f32 %v91, %v85
    %v94 = vmul.f32 %v92, %v86
    %v95 = vadd.f32 %v81, %v93
    %v96 = vadd.f32 %v82, %v94
    %v97 = vsub.f32 %v83, %v93
    %v98 = vsub.f32 %v84, %v94
    %v99 = vmul.f32 %v55, 0.0625
    %v100 = vmul.f32 %v56, 0.0625
    %vm101 = vcmp.gt.f32.partialorder %v97, %v99
    %vm102 = vcmp.gt.f32.partialorder %v98, %v100
    %v103 = vsel %vm101, 1, 0
    %v104 = vsel %vm102, 1, 0
    %v105 = vcvt.s32.f32 %v103
    %v106 = vcvt.s32.f32 %v104
    %v107 = vmul.f32 %v105, %v99
    %v108 = vmul.f32 %v106, %v100
    %v109 = vadd.f32 %v95, %v107
    %v110 = vadd.f32 %v96, %v108
    %v111 = vsub.f32 %v97, %v107
    %v112 = vsub.f32 %v98, %v108
    %v113 = vmul.f32 %v55, 0.03125
    %v114 = vmul.f32 %v56, 0.03125
    %vm115 = vcmp.gt.f32.partialorder %v111, %v113
    %vm116 = vcmp.gt.f32.partialorder %v112, %v114
    %v117 = vsel %vm115, 1, 0
    %v118 = vsel %vm116, 1, 0
    %v119 = vcvt.s32.f32 %v117
    %v120 = vcvt.s32.f32 %v118
    %v121 = vmul.f32 %v119, %v113
    %v122 = vmul.f32 %v120, %v114
    %v123 = vadd.f32 %v109, %v121
    %v124 = vadd.f32 %v110, %v122
    %v125 = vsub.f32 %v111, %v121
    %v126 = vsub.f32 %v112, %v122
    %v127 = vmul.f32 %v55, 0.015625
    %v128 = vmul.f32 %v56, 0.015625
    %vm129 = vcmp.gt.f32.partialorder %v125, %v127
    %vm130 = vcmp.gt.f32.partialorder %v126, %v128
    %v131 = vsel %vm129, 1, 0
    %v132 = vsel %vm130, 1, 0
    %v133 = vcvt.s32.f32 %v131
    %v134 = vcvt.s32.f32 %v132
    %v135 = vmul.f32 %v133, %v127
    %v136 = vmul.f32 %v134, %v128
    %v137 = vadd.f32 %v123, %v135
    %v138 = vadd.f32 %v124, %v136
    %v139 = vsub.f32 %v125, %v135
    %v140 = vsub.f32 %v126, %v136
    %v141 = vmul.f32 %v55, 0.0078125
    %v142 = vmul.f32 %v56, 0.0078125
    %vm143 = vcmp.gt.f32.partialorder %v139, %v141
    %vm144 = vcmp.gt.f32.partialorder %v140, %v142
    %v145 = vsel %vm143, 1, 0
    %v146 = vsel %vm144, 1, 0
    %v147 = vcvt.s32.f32 %v145
    %v148 = vcvt.s32.f32 %v146
    %v149 = vmul.f32 %v147, %v141
    %v150 = vmul.f32 %v148, %v142
    %v151 = vadd.f32 %v137, %v149
    %v152 = vadd.f32 %v138, %v150
    %v153 = vsub.f32 %v139, %v149
    %v154 = vsub.f32 %v140, %v150
    %v155 = vmul.f32 %v55, 0.00390625
    %v156 = vmul.f32 %v56, 0.00390625
    %vm157 = vcmp.gt.f32.partialorder %v153, %v155
    %vm158 = vcmp.gt.f32.partialorder %v154, %v156
    %v159 = vsel %vm157, 1, 0
    %v160 = vsel %vm158, 1, 0
    %v161 = vcvt.s32.f32 %v159
    %v162 = vcvt.s32.f32 %v160
    %v163 = vmul.f32 %v161, %v155
    %v164 = vmul.f32 %v162, %v156
    %v165 = vadd.f32 %v151, %v163
    %v166 = vadd.f32 %v152, %v164
    %v167 = vsub.f32 %v153, %v163
    %v168 = vsub.f32 %v154, %v164
    %v169 = vmul.f32 %v55, 0.001953125
    %v170 = vmul.f32 %v56, 0.001953125
    %vm171 = vcmp.gt.f32.partialorder %v167, %v169
    %vm172 = vcmp.gt.f32.partialorder %v168, %v170
    %v173 = vsel %vm171, 1, 0
    %v174 = vsel %vm172, 1, 0
    %v175 = vcvt.s32.f32 %v173
    %v176 = vcvt.s32.f32 %v174
    %v177 = vmul.f32 %v175, %v169
    %v178 = vmul.f32 %v176, %v170
    %v179 = vadd.f32 %v165, %v177
    %v180 = vadd.f32 %v166, %v178
    %v181 = vsub.f32 %v167, %v177
    %v182 = vsub.f32 %v168, %v178
    %v183 = vmul.f32 %v55, 0.0009765625
    %v184 = vmul.f32 %v56, 0.0009765625
    %vm185 = vcmp.gt.f32.partialorder %v181, %v183
    %vm186 = vcmp.gt.f32.partialorder %v182, %v184
    %v187 = vsel %vm185, 1, 0
    %v188 = vsel %vm186, 1, 0
    %v189 = vcvt.s32.f32 %v187
    %v190 = vcvt.s32.f32 %v188
    %v191 = vmul.f32 %v189, %v183
    %v192 = vmul.f32 %v190, %v184
    %v193 = vadd.f32 %v179, %v191
    %v194 = vadd.f32 %v180, %v192
    %v195 = vsub.f32 %v181, %v191
    %v196 = vsub.f32 %v182, %v192
    %v197 = vmul.f32 %v55, 0.00048828125
    %v198 = vmul.f32 %v56, 0.00048828125
    %vm199 = vcmp.gt.f32.partialorder %v195, %v197
    %vm200 = vcmp.gt.f32.partialorder %v196, %v198
    %v201 = vsel %vm199, 1, 0
    %v202 = vsel %vm200, 1, 0
    %v203 = vcvt.s32.f32 %v201
    %v204 = vcvt.s32.f32 %v202
    %v205 = vmul.f32 %v203, %v197
    %v206 = vmul.f32 %v204, %v198
    %v207 = vadd.f32 %v193, %v205
    %v208 = vadd.f32 %v194, %v206
    %v209 = vsub.f32 %v195, %v205
    %v210 = vsub.f32 %v196, %v206
    %v211 = vmul.f32 %v55, 0.00024414063
    %v212 = vmul.f32 %v56, 0.00024414063
    %vm213 = vcmp.gt.f32.partialorder %v209, %v211
    %vm214 = vcmp.gt.f32.partialorder %v210, %v212
    %v215 = vsel %vm213, 1, 0
    %v216 = vsel %vm214, 1, 0
    %v217 = vcvt.s32.f32 %v215
    %v218 = vcvt.s32.f32 %v216
    %v219 = vmul.f32 %v217, %v211
    %v220 = vmul.f32 %v218, %v212
    %v221 = vadd.f32 %v207, %v219
    %v222 = vadd.f32 %v208, %v220
    %v223 = vsub.f32 %v209, %v219
    %v224 = vsub.f32 %v210, %v220
    %v225 = vmul.f32 %v55, 0.00012207031
    %v226 = vmul.f32 %v56, 0.00012207031
    %vm227 = vcmp.gt.f32.partialorder %v223, %v225
    %vm228 = vcmp.gt.f32.partialorder %v224, %v226
    %v229 = vsel %vm227, 1, 0
    %v230 = vsel %vm228, 1, 0
    %v231 = vcvt.s32.f32 %v229
    %v232 = vcvt.s32.f32 %v230
    %v233 = vmul.f32 %v231, %v225
    %v234 = vmul.f32 %v232, %v226
    %v235 = vadd.f32 %v221, %v233
    %v236 = vadd.f32 %v222, %v234
    %v237 = vsub.f32 %v223, %v233
    %v238 = vsub.f32 %v224, %v234
    %v239 = vmul.f32 %v55, 6.1035156e-05
    %v240 = vmul.f32 %v56, 6.1035156e-05
    %vm241 = vcmp.gt.f32.partialorder %v237, %v239
    %vm242 = vcmp.gt.f32.partialorder %v238, %v240
    %v243 = vsel %vm241, 1, 0
    %v244 = vsel %vm242, 1, 0
    %v245 = vcvt.s32.f32 %v243
    %v246 = vcvt.s32.f32 %v244
    %v247 = vmul.f32 %v245, %v239
    %v248 = vmul.f32 %v246, %v240
    %v249 = vadd.f32 %v235, %v247
    %v250 = vadd.f32 %v236, %v248
    %v251 = vsub.f32 %v237, %v247
    %v252 = vsub.f32 %v238, %v248
    %v253 = vmul.f32 %v55, 3.0517578e-05
    %v254 = vmul.f32 %v56, 3.0517578e-05
    %vm255 = vcmp.gt.f32.partialorder %v251, %v253
    %vm256 = vcmp.gt.f32.partialorder %v252, %v254
    %v257 = vsel %vm255, 1, 0
    %v258 = vsel %vm256, 1, 0
    %v259 = vcvt.s32.f32 %v257
    %v260 = vcvt.s32.f32 %v258
    %v261 = vmul.f32 %v259, %v253
    %v262 = vmul.f32 %v260, %v254
    %v263 = vadd.f32 %v249, %v261
    %v264 = vadd.f32 %v250, %v262
    %v265 = vsub.f32 %v251, %v261
    %v266 = vsub.f32 %v252, %v262
    %v267 = vmul.f32 %v55, 1.5258789e-05
    %v268 = vmul.f32 %v56, 1.5258789e-05
    %vm269 = vcmp.gt.f32.partialorder %v265, %v267
    %vm270 = vcmp.gt.f32.partialorder %v266, %v268
    %v271 = vsel %vm269, 1, 0
    %v272 = vsel %vm270, 1, 0
    %v273 = vcvt.s32.f32 %v271
    %v274 = vcvt.s32.f32 %v272
    %v275 = vmul.f32 %v273, %v267
    %v276 = vmul.f32 %v274, %v268
    %v277 = vadd.f32 %v263, %v275
    %v278 = vadd.f32 %v264, %v276
    %v279 = vmul.f32 %v277, %v49
    %v280 = vmul.f32 %v278, %v50
    %v281 = vmul.f32 %v279, %v279
    %v282 = vmul.f32 %v280, %v280
    %283 = vadd.xlane.f32.xlu0 %v281
    %v284 = vpop.xlane.xlu0 %283
    %285 = vadd.xlane.f32.xlu0 %v282
    %v286 = vpop.xlane.xlu0 %285
    %v287 = vmul.f32 %v284, 0.0078125
    %v288 = vmul.f32 %v286, 0.0078125
    %v289 = vrsqrt.pop %v287
    %v290 = vmul.f32 %v287, %v289
    %vm291 = vcmp.eq.f32.partialorder %v287, inf
    %v292 = vsel %vm291, %v287, %v290
    %vm293 = vcmp.eq.f32.partialorder %v287, 0.0
    %v294 = vand.u32 %v287, 2147483648
    %v295 = vsel %vm293, %v294, %v292
    %v296 = vrsqrt.pop %v288
    %v297 = vmul.f32 %v288, %v296
    %vm298 = vcmp.eq.f32.partialorder %v288, inf
    %v299 = vsel %vm298, %v288, %v297
    %vm300 = vcmp.eq.f32.partialorder %v288, 0.0
    %v301 = vand.u32 %v288, 2147483648
    %v302 = vsel %vm300, %v301, %v299
    %v303 = vrcp.pop %v295
    %v304 = vmul.f32 1.0, %v303
    %v305 = vrcp.pop %v302
    %v306 = vmul.f32 1.0, %v305
    %v307 = vmul.f32 %v279, %v304
    %v308 = vmul.f32 %v280, %v306
    %v309 = vmax.f32 %v307, -50.0
    %v310 = vmax.f32 %v308, -50.0
    %v311 = vmin.f32 %v309, 50.0
    %v312 = vmin.f32 %v310, 50.0
    %vm313 = vcmp.gt.f32.partialorder %v311, 0.0
    %vm314 = vcmp.gt.f32.partialorder %v312, 0.0
    %vm315 = vcmp.lt.f32.partialorder %v311, 0.0
    %vm316 = vcmp.lt.f32.partialorder %v312, 0.0
    %v317 = vsel %vm315, -1.0, 0.0
    %v318 = vsel %vm316, -1.0, 0.0
    %v319 = vsel %vm313, 1.0, %v317
    %v320 = vsel %vm314, 1.0, %v318
    %v321 = vand.u32 2147483647, %v311
    %v322 = vand.u32 2147483647, %v312
    %vm323 = vcmp.lt.f32.partialorder %v321, 2.0
    %vm324 = vcmp.lt.f32.partialorder %v322, 2.0
    %v325 = vsel %vm323, 2.0, 50.0
    %v326 = vsel %vm324, 2.0, 50.0
    %v327 = vmul.f32 %v325, 0.5
    %v328 = vmul.f32 %v326, 0.5
    %vm329 = vcmp.gt.f32.partialorder %v321, %v327
    %vm330 = vcmp.gt.f32.partialorder %v322, %v328
    %v331 = vsel %vm329, 1, 0
    %v332 = vsel %vm330, 1, 0
    %v333 = vcvt.s32.f32 %v331
    %v334 = vcvt.s32.f32 %v332
    %v335 = vmul.f32 %v333, %v327
    %v336 = vmul.f32 %v334, %v328
    %v337 = vadd.f32 %v335, 0.0
    %v338 = vadd.f32 %v336, 0.0
    %v339 = vsub.f32 %v321, %v335
    %v340 = vsub.f32 %v322, %v336
    %v341 = vmul.f32 %v325, 0.25
    %v342 = vmul.f32 %v326, 0.25
    %vm343 = vcmp.gt.f32.partialorder %v339, %v341
    %vm344 = vcmp.gt.f32.partialorder %v340, %v342
    %v345 = vsel %vm343, 1, 0
    %v346 = vsel %vm344, 1, 0
    %v347 = vcvt.s32.f32 %v345
    %v348 = vcvt.s32.f32 %v346
    %v349 = vmul.f32 %v347, %v341
    %v350 = vmul.f32 %v348, %v342
    %v351 = vadd.f32 %v337, %v349
    %v352 = vadd.f32 %v338, %v350
    %v353 = vsub.f32 %v339, %v349
    %v354 = vsub.f32 %v340, %v350
    %v355 = vmul.f32 %v325, 0.125
    %v356 = vmul.f32 %v326, 0.125
    %vm357 = vcmp.gt.f32.partialorder %v353, %v355
    %vm358 = vcmp.gt.f32.partialorder %v354, %v356
    %v359 = vsel %vm357, 1, 0
    %v360 = vsel %vm358, 1, 0
    %v361 = vcvt.s32.f32 %v359
    %v362 = vcvt.s32.f32 %v360
    %v363 = vmul.f32 %v361, %v355
    %v364 = vmul.f32 %v362, %v356
    %v365 = vadd.f32 %v351, %v363
    %v366 = vadd.f32 %v352, %v364
    %v367 = vsub.f32 %v353, %v363
    %v368 = vsub.f32 %v354, %v364
    %v369 = vmul.f32 %v325, 0.0625
    %v370 = vmul.f32 %v326, 0.0625
    %vm371 = vcmp.gt.f32.partialorder %v367, %v369
    %vm372 = vcmp.gt.f32.partialorder %v368, %v370
    %v373 = vsel %vm371, 1, 0
    %v374 = vsel %vm372, 1, 0
    %v375 = vcvt.s32.f32 %v373
    %v376 = vcvt.s32.f32 %v374
    %v377 = vmul.f32 %v375, %v369
    %v378 = vmul.f32 %v376, %v370
    %v379 = vadd.f32 %v365, %v377
    %v380 = vadd.f32 %v366, %v378
    %v381 = vsub.f32 %v367, %v377
    %v382 = vsub.f32 %v368, %v378
    %v383 = vmul.f32 %v325, 0.03125
    %v384 = vmul.f32 %v326, 0.03125
    %vm385 = vcmp.gt.f32.partialorder %v381, %v383
    %vm386 = vcmp.gt.f32.partialorder %v382, %v384
    %v387 = vsel %vm385, 1, 0
    %v388 = vsel %vm386, 1, 0
    %v389 = vcvt.s32.f32 %v387
    %v390 = vcvt.s32.f32 %v388
    %v391 = vmul.f32 %v389, %v383
    %v392 = vmul.f32 %v390, %v384
    %v393 = vadd.f32 %v379, %v391
    %v394 = vadd.f32 %v380, %v392
    %v395 = vsub.f32 %v381, %v391
    %v396 = vsub.f32 %v382, %v392
    %v397 = vmul.f32 %v325, 0.015625
    %v398 = vmul.f32 %v326, 0.015625
    %vm399 = vcmp.gt.f32.partialorder %v395, %v397
    %vm400 = vcmp.gt.f32.partialorder %v396, %v398
    %v401 = vsel %vm399, 1, 0
    %v402 = vsel %vm400, 1, 0
    %v403 = vcvt.s32.f32 %v401
    %v404 = vcvt.s32.f32 %v402
    %v405 = vmul.f32 %v403, %v397
    %v406 = vmul.f32 %v404, %v398
    %v407 = vadd.f32 %v393, %v405
    %v408 = vadd.f32 %v394, %v406
    %v409 = vsub.f32 %v395, %v405
    %v410 = vsub.f32 %v396, %v406
    %v411 = vmul.f32 %v325, 0.0078125
    %v412 = vmul.f32 %v326, 0.0078125
    %vm413 = vcmp.gt.f32.partialorder %v409, %v411
    %vm414 = vcmp.gt.f32.partialorder %v410, %v412
    %v415 = vsel %vm413, 1, 0
    %v416 = vsel %vm414, 1, 0
    %v417 = vcvt.s32.f32 %v415
    %v418 = vcvt.s32.f32 %v416
    %v419 = vmul.f32 %v417, %v411
    %v420 = vmul.f32 %v418, %v412
    %v421 = vadd.f32 %v407, %v419
    %v422 = vadd.f32 %v408, %v420
    %v423 = vsub.f32 %v409, %v419
    %v424 = vsub.f32 %v410, %v420
    %v425 = vmul.f32 %v325, 0.00390625
    %v426 = vmul.f32 %v326, 0.00390625
    %vm427 = vcmp.gt.f32.partialorder %v423, %v425
    %vm428 = vcmp.gt.f32.partialorder %v424, %v426
    %v429 = vsel %vm427, 1, 0
    %v430 = vsel %vm428, 1, 0
    %v431 = vcvt.s32.f32 %v429
    %v432 = vcvt.s32.f32 %v430
    %v433 = vmul.f32 %v431, %v425
    %v434 = vmul.f32 %v432, %v426
    %v435 = vadd.f32 %v421, %v433
    %v436 = vadd.f32 %v422, %v434
    %v437 = vsub.f32 %v423, %v433
    %v438 = vsub.f32 %v424, %v434
    %v439 = vmul.f32 %v325, 0.001953125
    %v440 = vmul.f32 %v326, 0.001953125
    %vm441 = vcmp.gt.f32.partialorder %v437, %v439
    %vm442 = vcmp.gt.f32.partialorder %v438, %v440
    %v443 = vsel %vm441, 1, 0
    %v444 = vsel %vm442, 1, 0
    %v445 = vcvt.s32.f32 %v443
    %v446 = vcvt.s32.f32 %v444
    %v447 = vmul.f32 %v445, %v439
    %v448 = vmul.f32 %v446, %v440
    %v449 = vadd.f32 %v435, %v447
    %v450 = vadd.f32 %v436, %v448
    %v451 = vsub.f32 %v437, %v447
    %v452 = vsub.f32 %v438, %v448
    %v453 = vmul.f32 %v325, 0.0009765625
    %v454 = vmul.f32 %v326, 0.0009765625
    %vm455 = vcmp.gt.f32.partialorder %v451, %v453
    %vm456 = vcmp.gt.f32.partialorder %v452, %v454
    %v457 = vsel %vm455, 1, 0
    %v458 = vsel %vm456, 1, 0
    %v459 = vcvt.s32.f32 %v457
    %v460 = vcvt.s32.f32 %v458
    %v461 = vmul.f32 %v459, %v453
    %v462 = vmul.f32 %v460, %v454
    %v463 = vadd.f32 %v449, %v461
    %v464 = vadd.f32 %v450, %v462
    %v465 = vsub.f32 %v451, %v461
    %v466 = vsub.f32 %v452, %v462
    %v467 = vmul.f32 %v325, 0.00048828125
    %v468 = vmul.f32 %v326, 0.00048828125
    %vm469 = vcmp.gt.f32.partialorder %v465, %v467
    %vm470 = vcmp.gt.f32.partialorder %v466, %v468
    %v471 = vsel %vm469, 1, 0
    %v472 = vsel %vm470, 1, 0
    %v473 = vcvt.s32.f32 %v471
    %v474 = vcvt.s32.f32 %v472
    %v475 = vmul.f32 %v473, %v467
    %v476 = vmul.f32 %v474, %v468
    %v477 = vadd.f32 %v463, %v475
    %v478 = vadd.f32 %v464, %v476
    %v479 = vsub.f32 %v465, %v475
    %v480 = vsub.f32 %v466, %v476
    %v481 = vmul.f32 %v325, 0.00024414063
    %v482 = vmul.f32 %v326, 0.00024414063
    %vm483 = vcmp.gt.f32.partialorder %v479, %v481
    %vm484 = vcmp.gt.f32.partialorder %v480, %v482
    %v485 = vsel %vm483, 1, 0
    %v486 = vsel %vm484, 1, 0
    %v487 = vcvt.s32.f32 %v485
    %v488 = vcvt.s32.f32 %v486
    %v489 = vmul.f32 %v487, %v481
    %v490 = vmul.f32 %v488, %v482
    %v491 = vadd.f32 %v477, %v489
    %v492 = vadd.f32 %v478, %v490
    %v493 = vsub.f32 %v479, %v489
    %v494 = vsub.f32 %v480, %v490
    %v495 = vmul.f32 %v325, 0.00012207031
    %v496 = vmul.f32 %v326, 0.00012207031
    %vm497 = vcmp.gt.f32.partialorder %v493, %v495
    %vm498 = vcmp.gt.f32.partialorder %v494, %v496
    %v499 = vsel %vm497, 1, 0
    %v500 = vsel %vm498, 1, 0
    %v501 = vcvt.s32.f32 %v499
    %v502 = vcvt.s32.f32 %v500
    %v503 = vmul.f32 %v501, %v495
    %v504 = vmul.f32 %v502, %v496
    %v505 = vadd.f32 %v491, %v503
    %v506 = vadd.f32 %v492, %v504
    %v507 = vsub.f32 %v493, %v503
    %v508 = vsub.f32 %v494, %v504
    %v509 = vmul.f32 %v325, 6.1035156e-05
    %v510 = vmul.f32 %v326, 6.1035156e-05
    %vm511 = vcmp.gt.f32.partialorder %v507, %v509
    %vm512 = vcmp.gt.f32.partialorder %v508, %v510
    %v513 = vsel %vm511, 1, 0
    %v514 = vsel %vm512, 1, 0
    %v515 = vcvt.s32.f32 %v513
    %v516 = vcvt.s32.f32 %v514
    %v517 = vmul.f32 %v515, %v509
    %v518 = vmul.f32 %v516, %v510
    %v519 = vadd.f32 %v505, %v517
    %v520 = vadd.f32 %v506, %v518
    %v521 = vsub.f32 %v507, %v517
    %v522 = vsub.f32 %v508, %v518
    %v523 = vmul.f32 %v325, 3.0517578e-05
    %v524 = vmul.f32 %v326, 3.0517578e-05
    %vm525 = vcmp.gt.f32.partialorder %v521, %v523
    %vm526 = vcmp.gt.f32.partialorder %v522, %v524
    %v527 = vsel %vm525, 1, 0
    %v528 = vsel %vm526, 1, 0
    %v529 = vcvt.s32.f32 %v527
    %v530 = vcvt.s32.f32 %v528
    %v531 = vmul.f32 %v529, %v523
    %v532 = vmul.f32 %v530, %v524
    %v533 = vadd.f32 %v519, %v531
    %v534 = vadd.f32 %v520, %v532
    %v535 = vsub.f32 %v521, %v531
    %v536 = vsub.f32 %v522, %v532
    %v537 = vmul.f32 %v325, 1.5258789e-05
    %v538 = vmul.f32 %v326, 1.5258789e-05
    %vm539 = vcmp.gt.f32.partialorder %v535, %v537
    %vm540 = vcmp.gt.f32.partialorder %v536, %v538
    %v541 = vsel %vm539, 1, 0
    %v542 = vsel %vm540, 1, 0
    %v543 = vcvt.s32.f32 %v541
    %v544 = vcvt.s32.f32 %v542
    %v545 = vmul.f32 %v543, %v537
    %v546 = vmul.f32 %v544, %v538
    %v547 = vadd.f32 %v533, %v545
    %v548 = vadd.f32 %v534, %v546
    %v549 = vmul.f32 %v547, %v319
    %v550 = vmul.f32 %v548, %v320
    %v551 = vld [vmem:[%s1] sm:$0x1]
    %v553 = vlaneseq
    %v554 = vshrl.u32 %v553, 7
    %v555 = vsub.s32 0, %v554
    %v556 = vrot.slane %v551, %v555
    %v558 = vmul.f32 %v549, %v556
    %v559 = vmul.f32 %v550, %v556
    %v560 = vld [vmem:[%s2] sm:$0x1]
    %v562 = vlaneseq
    %v563 = vshrl.u32 %v562, 7
    %v564 = vsub.s32 0, %v563
    %v565 = vrot.slane %v560, %v564
    %v567 = vadd.f32 %v558, %v565
    %v568 = vadd.f32 %v559, %v565
    %569 = vst [vmem:[#allocation5] sm:$0xff] %v567
    %570 = vst [vmem:[#allocation5 + $0x8] sm:$0xff] %v568
    // Predicated region
    $region18: #{tpu_custom_call.1} parent=1 // pred_check
      _
    $region19: #{tpu_custom_call.1} parent=1 // pred_check_branch
      %572 = sbr.rel (0) target = $region21
    $region20: #{tpu_custom_call.1} parent=1 // pred_region
      %s574 = ssub.s32 256, 256
      %575 = vsyncadd [#allocation4], %s574
      %s576 = sshll.u32 [#allocation5], 4
      %s577 = int_to_ptr.vmem [resolvable:$true] %s576
      %582 = dma.vmem_to_hbm [thread:$0]  %s577, 256, %s3, [#allocation4], 128, 128, 8
    $region21: #{tpu_custom_call.1} parent=1 // pred_fallthru
      _
    // Predicated region
    $region22: #{tpu_custom_call.1} parent=1 // pred_check
      _
    $region23: #{tpu_custom_call.1} parent=1 // pred_check_branch
      %584 = sbr.rel (0) target = $region25
    $region24: #{tpu_custom_call.1} parent=1 // pred_region
      %585 = dma.done [#allocation4], 256
    $region25: #{tpu_custom_call.1} parent=1 // pred_fallthru
      _
    %586 = vsyncpa [#allocation3], 1
    %587 = vsyncpa [#allocation4], 1

</llo_original>
